<compile_context>
chip_gen: v7x
topology: tpu7x:2x2x1
jax: 0.10.0
libtpu: 0.0.40
codegen_flags: <defaults>
</compile_context>

<pallas_src>
import functools

import jax
import jax.numpy as jnp
from jax.experimental import pallas as pl
from jax.experimental.pallas import tpu as pltpu

HIDDEN = 128   # feature width (nn.Linear(*, 128))
HEAD = 64      # per-head hidden width (nn.Linear(128, 64))
PAD = 128      # lane-dense packed width for head outputs / kernel output


def ddqn_kernel(state_ref, mask_ref, w1_ref, wstack_ref, bstack_ref, out_ref,
                *, batch, num_actions):
    # feature MLP: x @ (W1/8) + b1 -> ReLU -> @ W2 + b2 -> ReLU
    # (the /8 normalization is folded into w1, so no pre-scale here)
    x = state_ref[...]
    h = jnp.maximum(
        jnp.dot(x, w1_ref[...], preferred_element_type=jnp.float32)
        + bstack_ref[0:1, :], 0.0)
    h = jnp.maximum(
        jnp.dot(h, wstack_ref[0], preferred_element_type=jnp.float32)
        + bstack_ref[1:2, :], 0.0)

    # fused head layer 1: [wa1 | wv1] -> one (128,128) matmul + ReLU.
    # av lanes [0:64] = advantage-head hidden, lanes [64:128] = value-head.
    av = jnp.maximum(
        jnp.dot(h, wstack_ref[1], preferred_element_type=jnp.float32)
        + bstack_ref[2:3, :], 0.0)

    # head layer 2, two padded (128,128) matmuls:
    #   q_adv: advantage logits in lanes [0:A], exact 0 in padded lanes
    #   q_val: the scalar value logit replicated into every lane (broadcast
    #          baked into the packed weights -> no lane extraction needed)
    q_adv = (jnp.dot(av, wstack_ref[2], preferred_element_type=jnp.float32)
             + bstack_ref[3:4, :])
    q_val = (jnp.dot(av, wstack_ref[3], preferred_element_type=jnp.float32)
             + bstack_ref[4:5, :])

    mask = mask_ref[...]                              # (B, 128); zeros past A
    eps = jnp.float32(1e-5)

    # safe_softmax(advantage, mask): padded lanes of q_adv are exactly 0, so
    # exp(0) * 0 = 0 there -- no iota / where cleanup required.
    ea = jnp.exp(q_adv) * mask
    adv_sm = ea * pl.reciprocal(jnp.sum(ea, axis=1, keepdims=True) + eps,
                                approx=True)

    # safe_softmax(value, mask): q_val already carries the value in all lanes,
    # matching the PyTorch (B,1) * (B,A) broadcast semantics.
    ev = jnp.exp(q_val) * mask
    val_sm = ev * pl.reciprocal(jnp.sum(ev, axis=1, keepdims=True) + eps,
                                approx=True)

    # advantage.mean() is over (batch, num_actions) elements; padded lanes of
    # adv_sm are exactly 0, so sum / (B*A) reproduces it.
    mean_adv = jnp.sum(adv_sm) * jnp.float32(1.0 / (batch * num_actions))

    out_ref[...] = val_sm + adv_sm - mean_adv


def init_params(key, input_size, num_actions):
    """Raw PyTorch-layout params: W as (in, out), b as (1, out)."""
    ks = jax.random.split(key, 6)

    def linear(k, fan_in, fan_out):
        bound = 1.0 / jnp.sqrt(jnp.float32(fan_in))
        kw, kb = jax.random.split(k)
        w = jax.random.uniform(kw, (fan_in, fan_out), jnp.float32, -bound, bound)
        b = jax.random.uniform(kb, (1, fan_out), jnp.float32, -bound, bound)
        return w, b

    w1, b1 = linear(ks[0], input_size, HIDDEN)
    w2, b2 = linear(ks[1], HIDDEN, HIDDEN)
    wa1, ba1 = linear(ks[2], HIDDEN, HEAD)
    wa2, ba2 = linear(ks[3], HEAD, num_actions)
    wv1, bv1 = linear(ks[4], HIDDEN, HEAD)
    wv2, bv2 = linear(ks[5], HEAD, 1)
    return (w1, b1, w2, b2, wa1, ba1, wa2, ba2, wv1, bv1, wv2, bv2)


def pack_params(params, num_actions):
    """Pack 12 tensors into 3 lane-dense VMEM slabs for the kernel."""
    (w1, b1, w2, b2, wa1, ba1, wa2, ba2, wv1, bv1, wv2, bv2) = params
    assert num_actions <= PAD, "packed head requires num_actions <= 128"

    # fold the /8 input normalization into w1 (exact power-of-two scale)
    w1f = w1 * jnp.float32(1.0 / 8.0)

    # fused head layer 1: (128, 64)|(128, 64) -> (128, 128)
    wh1 = jnp.concatenate([wa1, wv1], axis=1)
    bh1 = jnp.concatenate([ba1, bv1], axis=1)

    # head layer 2a (advantage): lanes [0:A] from the first HEAD sublanes of
    # av, exact zeros elsewhere (-> padded softmax lanes are exactly 0).
    w_adv = jnp.zeros((HIDDEN, PAD), jnp.float32)
    w_adv = w_adv.at[:HEAD, :num_actions].set(wa2)
    b_adv = jnp.zeros((1, PAD), jnp.float32)
    b_adv = b_adv.at[:, :num_actions].set(ba2)

    # head layer 2b (value): replicate the single value column across all 128
    # lanes at pack time so the kernel never extracts/broadcasts a lane.
    w_val = jnp.zeros((HIDDEN, PAD), jnp.float32)
    w_val = w_val.at[HEAD:, :].set(jnp.tile(wv2, (1, PAD)))
    b_val = jnp.tile(bv2, (1, PAD))

    w_stack = jnp.stack([w2, wh1, w_adv, w_val], axis=0)            # (4,128,128)
    b_stack = jnp.concatenate([b1, b2, bh1, b_adv, b_val], axis=0)  # (5,128)
    return w1f, w_stack, b_stack


@jax.jit
def ddqn_forward(state, action_mask, packed):
    w1, w_stack, b_stack = packed
    B = state.shape[0]
    A = action_mask.shape[1]
    P = b_stack.shape[1]

    # pad the mask with zero lanes so the whole epilogue stays 128-lane dense
    mask = jnp.pad(action_mask.astype(jnp.float32), ((0, 0), (0, P - A)))

    kern = functools.partial(ddqn_kernel, batch=B, num_actions=A)
    out = pl.pallas_call(
        kern,
        out_shape=jax.ShapeDtypeStruct((B, P), jnp.float32),
        in_specs=[pl.BlockSpec(memory_space=pltpu.MemorySpace.VMEM)] * 5,
        out_specs=pl.BlockSpec(memory_space=pltpu.MemorySpace.VMEM),
    )(state, mask, w1, w_stack, b_stack)
    return out[:, :A]


def ddqn_reference(state, action_mask, params):
    """Pure-JAX mirror of the PyTorch forward (uses the RAW params)."""
    (w1, b1, w2, b2, wa1, ba1, wa2, ba2, wv1, bv1, wv2, bv2) = params
    x = state / 8.0
    h = jnp.maximum(x @ w1 + b1, 0.0)
    h = jnp.maximum(h @ w2 + b2, 0.0)
    adv = jnp.maximum(h @ wa1 + ba1, 0.0) @ wa2 + ba2
    val = jnp.maximum(h @ wv1 + bv1, 0.0) @ wv2 + bv2

    def safe_softmax(vec, mask):
        e = jnp.exp(vec) * mask
        return e / (jnp.sum(e, axis=1, keepdims=True) + 1e-5)

    adv_sm = safe_softmax(adv, action_mask)
    val_sm = safe_softmax(val, action_mask)
    return val_sm + adv_sm - jnp.mean(adv_sm)


if __name__ == "__main__":
    # Minesweeper-style: flattened board as input, one action per cell.
    B, input_size, num_actions = 8, 64, 64

    key = jax.random.PRNGKey(0)
    k_state, k_mask, k_params = jax.random.split(key, 3)

    # cell values 0..8 (hence the /8 normalization in forward)
    state = jax.random.randint(k_state, (B, input_size), 0, 9).astype(jnp.float32)
    action_mask = (jax.random.uniform(k_mask, (B, num_actions)) > 0.5).astype(
        jnp.float32)

    params = init_params(k_params, input_size, num_actions)
    packed = pack_params(params, num_actions)

    out = ddqn_forward(state, action_mask, packed)
    jax.block_until_ready(out)

    ref = ddqn_reference(state, action_mask, params)
    assert out.shape == (B, num_actions)
    # approx-reciprocal in the softmax denominators => modest tolerance
    assert jnp.allclose(out, ref, atol=2e-3, rtol=2e-3)

    # TODO(synk): select_action's epsilon-greedy branch is host-side control
    # flow (random.random / np.nonzero) and is intentionally not a kernel.
    print("KERNEL_OK")
</pallas_src>

<mosaic_0001>
module attributes {stable_mosaic.version = 11 : i64} {
  func.func @ddqn_kernel(%arg0: memref<8x64xf32, #tpu.memory_space<vmem>>, %arg1: memref<8x128xf32, #tpu.memory_space<vmem>>, %arg2: memref<64x128xf32, #tpu.memory_space<vmem>>, %arg3: memref<4x128x128xf32, #tpu.memory_space<vmem>>, %arg4: memref<5x128xf32, #tpu.memory_space<vmem>>, %arg5: memref<8x128xf32, #tpu.memory_space<vmem>>) attributes {dimension_semantics = [], scalar_prefetch = 0 : i64, scratch_operands = 0 : i64, tpu.core_type = #tpu.core_type<tc>} {
    %c0 = arith.constant 0 : index
    %c0_0 = arith.constant 0 : index
    %0 = vector.load %arg0[%c0, %c0_0] : memref<8x64xf32, #tpu.memory_space<vmem>>, vector<8x64xf32>
    %c0_1 = arith.constant 0 : index
    %c0_2 = arith.constant 0 : index
    %1 = vector.load %arg2[%c0_1, %c0_2] : memref<64x128xf32, #tpu.memory_space<vmem>>, vector<64x128xf32>
    %cst = arith.constant dense<0.000000e+00> : vector<8x128xf32>
    %2 = tpu.matmul %0, %1, %cst {dimension_numbers = #tpu.dot_dimension_numbers<[1], [0], [0], [1], [0, 0, 1, 1], [], []>} : vector<8x64xf32>, vector<64x128xf32>, vector<8x128xf32> -> vector<8x128xf32>
    %c0_3 = arith.constant 0 : index
    %c0_4 = arith.constant 0 : index
    %3 = vector.load %arg4[%c0_3, %c0_4] : memref<5x128xf32, #tpu.memory_space<vmem>>, vector<1x128xf32>
    %4 = vector.broadcast %3 : vector<1x128xf32> to vector<8x128xf32>
    %5 = arith.addf %2, %4 : vector<8x128xf32>
    %cst_5 = arith.constant 0.000000e+00 : f32
    %6 = vector.broadcast %cst_5 : f32 to vector<8x128xf32>
    %7 = arith.maximumf %5, %6 : vector<8x128xf32>
    %c0_6 = arith.constant 0 : index
    %c0_7 = arith.constant 0 : index
    %c0_8 = arith.constant 0 : index
    %8 = vector.load %arg3[%c0_6, %c0_7, %c0_8] : memref<4x128x128xf32, #tpu.memory_space<vmem>>, vector<1x128x128xf32>
    %9 = vector.shape_cast %8 : vector<1x128x128xf32> to vector<128x128xf32>
    %cst_9 = arith.constant dense<0.000000e+00> : vector<8x128xf32>
    %10 = tpu.matmul %7, %9, %cst_9 {dimension_numbers = #tpu.dot_dimension_numbers<[1], [0], [0], [1], [0, 0, 1, 1], [], []>} : vector<8x128xf32>, vector<128x128xf32>, vector<8x128xf32> -> vector<8x128xf32>
    %c1 = arith.constant 1 : index
    %c0_10 = arith.constant 0 : index
    %11 = vector.load %arg4[%c1, %c0_10] : memref<5x128xf32, #tpu.memory_space<vmem>>, vector<1x128xf32>
    %12 = vector.broadcast %11 : vector<1x128xf32> to vector<8x128xf32>
    %13 = arith.addf %10, %12 : vector<8x128xf32>
    %cst_11 = arith.constant 0.000000e+00 : f32
    %14 = vector.broadcast %cst_11 : f32 to vector<8x128xf32>
    %15 = arith.maximumf %13, %14 : vector<8x128xf32>
    %c1_12 = arith.constant 1 : index
    %c0_13 = arith.constant 0 : index
    %c0_14 = arith.constant 0 : index
    %16 = vector.load %arg3[%c1_12, %c0_13, %c0_14] : memref<4x128x128xf32, #tpu.memory_space<vmem>>, vector<1x128x128xf32>
    %17 = vector.shape_cast %16 : vector<1x128x128xf32> to vector<128x128xf32>
    %cst_15 = arith.constant dense<0.000000e+00> : vector<8x128xf32>
    %18 = tpu.matmul %15, %17, %cst_15 {dimension_numbers = #tpu.dot_dimension_numbers<[1], [0], [0], [1], [0, 0, 1, 1], [], []>} : vector<8x128xf32>, vector<128x128xf32>, vector<8x128xf32> -> vector<8x128xf32>
    %c2 = arith.constant 2 : index
    %c0_16 = arith.constant 0 : index
    %19 = vector.load %arg4[%c2, %c0_16] : memref<5x128xf32, #tpu.memory_space<vmem>>, vector<1x128xf32>
    %20 = vector.broadcast %19 : vector<1x128xf32> to vector<8x128xf32>
    %21 = arith.addf %18, %20 : vector<8x128xf32>
    %cst_17 = arith.constant 0.000000e+00 : f32
    %22 = vector.broadcast %cst_17 : f32 to vector<8x128xf32>
    %23 = arith.maximumf %21, %22 : vector<8x128xf32>
    %c2_18 = arith.constant 2 : index
    %c0_19 = arith.constant 0 : index
    %c0_20 = arith.constant 0 : index
    %24 = vector.load %arg3[%c2_18, %c0_19, %c0_20] : memref<4x128x128xf32, #tpu.memory_space<vmem>>, vector<1x128x128xf32>
    %25 = vector.shape_cast %24 : vector<1x128x128xf32> to vector<128x128xf32>
    %cst_21 = arith.constant dense<0.000000e+00> : vector<8x128xf32>
    %26 = tpu.matmul %23, %25, %cst_21 {dimension_numbers = #tpu.dot_dimension_numbers<[1], [0], [0], [1], [0, 0, 1, 1], [], []>} : vector<8x128xf32>, vector<128x128xf32>, vector<8x128xf32> -> vector<8x128xf32>
    %c3 = arith.constant 3 : index
    %c0_22 = arith.constant 0 : index
    %27 = vector.load %arg4[%c3, %c0_22] : memref<5x128xf32, #tpu.memory_space<vmem>>, vector<1x128xf32>
    %28 = vector.broadcast %27 : vector<1x128xf32> to vector<8x128xf32>
    %29 = arith.addf %26, %28 : vector<8x128xf32>
    %c3_23 = arith.constant 3 : index
    %c0_24 = arith.constant 0 : index
    %c0_25 = arith.constant 0 : index
    %30 = vector.load %arg3[%c3_23, %c0_24, %c0_25] : memref<4x128x128xf32, #tpu.memory_space<vmem>>, vector<1x128x128xf32>
    %31 = vector.shape_cast %30 : vector<1x128x128xf32> to vector<128x128xf32>
    %cst_26 = arith.constant dense<0.000000e+00> : vector<8x128xf32>
    %32 = tpu.matmul %23, %31, %cst_26 {dimension_numbers = #tpu.dot_dimension_numbers<[1], [0], [0], [1], [0, 0, 1, 1], [], []>} : vector<8x128xf32>, vector<128x128xf32>, vector<8x128xf32> -> vector<8x128xf32>
    %c4 = arith.constant 4 : index
    %c0_27 = arith.constant 0 : index
    %33 = vector.load %arg4[%c4, %c0_27] : memref<5x128xf32, #tpu.memory_space<vmem>>, vector<1x128xf32>
    %34 = vector.broadcast %33 : vector<1x128xf32> to vector<8x128xf32>
    %35 = arith.addf %32, %34 : vector<8x128xf32>
    %c0_28 = arith.constant 0 : index
    %c0_29 = arith.constant 0 : index
    %36 = vector.load %arg1[%c0_28, %c0_29] : memref<8x128xf32, #tpu.memory_space<vmem>>, vector<8x128xf32>
    %37 = math.exp %29 : vector<8x128xf32>
    %38 = arith.mulf %37, %36 : vector<8x128xf32>
    %cst_30 = arith.constant dense<0.000000e+00> : vector<8xf32>
    %39 = vector.multi_reduction <add>, %38, %cst_30 [1] : vector<8x128xf32> to vector<8xf32>
    %40 = vector.shape_cast %39 : vector<8xf32> to vector<8x1xf32>
    %cst_31 = arith.constant 9.99999974E-6 : f32
    %41 = vector.broadcast %cst_31 : f32 to vector<8x1xf32>
    %42 = arith.addf %40, %41 : vector<8x1xf32>
    %43 = tpu.reciprocal %42 {approx = true} : vector<8x1xf32> -> vector<8x1xf32>
    %44 = vector.broadcast %43 : vector<8x1xf32> to vector<8x128xf32>
    %45 = arith.mulf %38, %44 : vector<8x128xf32>
    %46 = math.exp %35 : vector<8x128xf32>
    %47 = arith.mulf %46, %36 : vector<8x128xf32>
    %cst_32 = arith.constant dense<0.000000e+00> : vector<8xf32>
    %48 = vector.multi_reduction <add>, %47, %cst_32 [1] : vector<8x128xf32> to vector<8xf32>
    %49 = vector.shape_cast %48 : vector<8xf32> to vector<8x1xf32>
    %cst_33 = arith.constant 9.99999974E-6 : f32
    %50 = vector.broadcast %cst_33 : f32 to vector<8x1xf32>
    %51 = arith.addf %49, %50 : vector<8x1xf32>
    %52 = tpu.reciprocal %51 {approx = true} : vector<8x1xf32> -> vector<8x1xf32>
    %53 = vector.broadcast %52 : vector<8x1xf32> to vector<8x128xf32>
    %54 = arith.mulf %47, %53 : vector<8x128xf32>
    %55 = vector.shape_cast %45 : vector<8x128xf32> to vector<1x8x128xf32>
    %cst_34 = arith.constant dense<0.000000e+00> : vector<1xf32>
    %56 = vector.multi_reduction <add>, %55, %cst_34 [1, 2] : vector<1x8x128xf32> to vector<1xf32>
    %57 = vector.shape_cast %56 : vector<1xf32> to vector<1x1x1xf32>
    %58 = vector.extract %57[0, 0, 0] : f32 from vector<1x1x1xf32>
    %cst_35 = arith.constant 0.001953125 : f32
    %59 = arith.mulf %58, %cst_35 : f32
    %60 = arith.addf %54, %45 : vector<8x128xf32>
    %61 = vector.broadcast %59 : f32 to vector<8x128xf32>
    %62 = arith.subf %60, %61 : vector<8x128xf32>
    %c0_36 = arith.constant 0 : index
    %c0_37 = arith.constant 0 : index
    %63 = vector.load %arg5[%c0_36, %c0_37] : memref<8x128xf32, #tpu.memory_space<vmem>>, vector<8x128xf32>
    tpu.vector_store %arg5[%c0_36, %c0_37], %62 {strides = array<i32>} : memref<8x128xf32, #tpu.memory_space<vmem>>, vector<8x128xf32>,
    return
  }
}

</mosaic_0001>

<llo_original>
// kernel: ddqn_forward.1
$region0: #{ddqn_forward.1}
  #allocation0 [shape = 'u32[]', space=smem, size = 0x4, offset = 0x4, fixed_abs, tag = 'smem constant byte address 0x4 - core index']
  #allocation1 [shape = 'u32[144,128]{1,0:T(1,128)}', space=vmem, size = 0x12000, scoped, tag = 'internal scratch']
  %s0 = inlined_call_operand.vmem [shape: f32[8,64], index: 0, kind: input, shape index: {}]
  %s1 = inlined_call_operand.vmem [shape: f32[8,128], index: 1, kind: input, shape index: {}]
  %s2 = inlined_call_operand.hbm [shape: f32[64,128], index: 2, kind: input, shape index: {}]
  %s3 = inlined_call_operand.hbm [shape: f32[4,128,128], index: 3, kind: input, shape index: {}]
  %s4 = inlined_call_operand.vmem [shape: f32[5,128], index: 4, kind: input, shape index: {}]
  %s5 = inlined_call_operand.hbm [shape: f32[8,128], index: 5, kind: output, shape index: {}]
  %s6 = sld [smem:[#allocation0]]
  $region38: #{ddqn_forward.1} parent=0
    _
  %s8 = ssub.s32 1, %s6
  %s9 = scalar_select 0, %s8, %s6
  $region1: #{ddqn_forward.1} parent=0
    #allocation2 [shape = 'u8[32768]{0}', space=vmem, size = 0x8000, scoped, tag = 'input window, operand 2, single buffered']
    #allocation3 [shape = 's32[1]{0}', space=sflag, size = 0x4, scoped, tag = 'scoped memory for ddqn_forward.1']
    #allocation4 [shape = 's32[1]{0}', space=sflag, size = 0x4, scoped, tag = 'scoped memory for ddqn_forward.1']
    #allocation5 [shape = 'u8[262144]{0}', space=vmem, size = 0x40000, scoped, tag = 'input window, operand 3, single buffered']
    #allocation6 [shape = 's32[1]{0}', space=sflag, size = 0x4, scoped, tag = 'scoped memory for ddqn_forward.1']
    #allocation7 [shape = 'u8[4096]{0}', space=vmem, size = 0x1000, scoped, tag = 'output window, operand 0, single buffered']
    %10 = vsyncpa [#allocation3], 0
    %11 = vsyncpa [#allocation6], 0
    %12 = vsyncpa [#allocation4], 0
    // Predicated region
    $region2: #{ddqn_forward.1} parent=1 // pred_check
      _
    $region3: #{ddqn_forward.1} parent=1 // pred_check_branch
      %14 = sbr.rel (0) target = $region5
    $region4: #{ddqn_forward.1} parent=1 // pred_region
      _
    $region5: #{ddqn_forward.1} parent=1 // pred_fallthru
      _
    // Predicated region
    $region6: #{ddqn_forward.1} parent=1 // pred_check
      _
    $region7: #{ddqn_forward.1} parent=1 // pred_check_branch
      %16 = sbr.rel (0) target = $region9
    $region8: #{ddqn_forward.1} parent=1 // pred_region
      _
    $region9: #{ddqn_forward.1} parent=1 // pred_fallthru
      _
    // Predicated region
    $region10: #{ddqn_forward.1} parent=1 // pred_check
      _
    $region11: #{ddqn_forward.1} parent=1 // pred_check_branch
      %18 = sbr.rel (0) target = $region13
    $region12: #{ddqn_forward.1} parent=1 // pred_region
      %s20 = ssub.s32 1024, 1024
      %21 = vsyncadd [#allocation3], %s20
      %s22 = sshll.u32 [#allocation2], 4
      %s23 = int_to_ptr.vmem [resolvable:$true] %s22
      %28 = dma.hbm_to_vmem [thread:$0]  %s2, 1024, %s23, [#allocation3], 128, 128, 8
    $region13: #{ddqn_forward.1} parent=1 // pred_fallthru
      _
    // Predicated region
    $region14: #{ddqn_forward.1} parent=1 // pred_check
      _
    $region15: #{ddqn_forward.1} parent=1 // pred_check_branch
      %30 = sbr.rel (0) target = $region17
    $region16: #{ddqn_forward.1} parent=1 // pred_region
      %s32 = ssub.s32 8192, 8192
      %33 = vsyncadd [#allocation6], %s32
      %s34 = sshll.u32 [#allocation5], 4
      %s35 = int_to_ptr.vmem [resolvable:$true] %s34
      %40 = dma.hbm_to_vmem [thread:$0]  %s3, 8192, %s35, [#allocation6], 128, 128, 8
    $region17: #{ddqn_forward.1} parent=1 // pred_fallthru
      _
    // Predicated region
    $region18: #{ddqn_forward.1} parent=1 // pred_check
      _
    $region19: #{ddqn_forward.1} parent=1 // pred_check_branch
      %42 = sbr.rel (0) target = $region21
    $region20: #{ddqn_forward.1} parent=1 // pred_region
      _
    $region21: #{ddqn_forward.1} parent=1 // pred_fallthru
      _
    // Predicated region
    $region22: #{ddqn_forward.1} parent=1 // pred_check
      _
    $region23: #{ddqn_forward.1} parent=1 // pred_check_branch
      %44 = sbr.rel (0) target = $region25
    $region24: #{ddqn_forward.1} parent=1 // pred_region
      %45 = dma.done [#allocation3], 1024
    $region25: #{ddqn_forward.1} parent=1 // pred_fallthru
      _
    // Predicated region
    $region26: #{ddqn_forward.1} parent=1 // pred_check
      _
    $region27: #{ddqn_forward.1} parent=1 // pred_check_branch
      %47 = sbr.rel (0) target = $region29
    $region28: #{ddqn_forward.1} parent=1 // pred_region
      %48 = dma.done [#allocation6], 8192
    $region29: #{ddqn_forward.1} parent=1 // pred_fallthru
      _
    %v49 = vld [vmem:[%s0] sm:$0xff]
    %v50 = vld [vmem:[#allocation2] sm:$0xff]
    %v51 = vld [vmem:[#allocation2 + $0x8] sm:$0xff]
    %v52 = vld [vmem:[#allocation2 + $0x10] sm:$0xff]
    %v53 = vld [vmem:[#allocation2 + $0x18] sm:$0xff]
    %v54 = vld [vmem:[#allocation2 + $0x20] sm:$0xff]
    %v55 = vld [vmem:[#allocation2 + $0x28] sm:$0xff]
    %v56 = vld [vmem:[#allocation2 + $0x30] sm:$0xff]
    %v57 = vld [vmem:[#allocation2 + $0x38] sm:$0xff]
    %v58 = vld [vmem:[%s4] sm:$0x1]
    %v59 = vlaneseq
    %v60 = vshrl.u32 %v59, 7
    %v61 = vsub.s32 0, %v60
    %v62 = vrot.slane %v58, %v61
    %vm63 = vcmask 523264
    %v65 = vsel %vm63, %v49, 0
    %67 = vmatprep.subr.mxu0 0.0
    %68 = vmatpush1.msra.mxu0 %v50
    %69 = vmatprep.subr.mxu0 0.0
    %70 = vmatpush1.msra.mxu0 %v51
    %71 = vmatprep.subr.mxu0 0.0
    %72 = vmatpush1.msra.mxu0 %v52
    %73 = vmatprep.subr.mxu0 0.0
    %74 = vmatpush1.msra.mxu0 %v53
    %75 = vmatprep.subr.mxu0 0.0
    %76 = vmatpush1.msra.mxu0 %v54
    %77 = vmatprep.subr.mxu0 0.0
    %78 = vmatpush1.msra.mxu0 %v55
    %79 = vmatprep.subr.mxu0 0.0
    %80 = vmatpush1.msra.mxu0 %v56
    %81 = vmatprep.subr.mxu0 0.0
    %82 = vmatpush1.msra.mxu0 %v57
    %83 = vmatprep.subr.mxu0 0.0
    %84 = vmatpush1.msra.mxu0 0.0
    %85 = vmatprep.subr.mxu0 0.0
    %86 = vmatpush1.msra.mxu0 0.0
    %87 = vmatprep.subr.mxu0 0.0
    %88 = vmatpush1.msra.mxu0 0.0
    %89 = vmatprep.subr.mxu0 0.0
    %90 = vmatpush1.msra.mxu0 0.0
    %91 = vmatprep.subr.mxu0 0.0
    %92 = vmatpush1.msra.mxu0 0.0
    %93 = vmatprep.subr.mxu0 0.0
    %94 = vmatpush1.msra.mxu0 0.0
    %95 = vmatprep.subr.mxu0 0.0
    %96 = vmatpush1.msra.mxu0 0.0
    %97 = vmatprep.subr.mxu0 0.0
    %98 = vmatpush1.msra.mxu0 0.0
    %99 = vmatprep.subr.mxu0 0.0
    %100 = vmatpush1.msra.mxu0 0.0
    %101 = vmatprep.subr.mxu0 0.0
    %102 = vmatpush1.msra.mxu0 0.0
    %103 = vmatprep.subr.mxu0 0.0
    %104 = vmatpush1.msra.mxu0 0.0
    %105 = vmatprep.subr.mxu0 0.0
    %106 = vmatpush1.msra.mxu0 0.0
    %107 = vmatprep.subr.mxu0 0.0
    %108 = vmatpush1.msra.mxu0 0.0
    %109 = vmatprep.subr.mxu0 0.0
    %110 = vmatpush1.msra.mxu0 0.0
    %111 = vmatprep.subr.mxu0 0.0
    %112 = vmatpush1.msra.mxu0 0.0
    %113 = vmatprep.subr.mxu0 0.0
    %114 = vmatpush1.msra.mxu0 0.0
    %115 = vmatprep.subr.mxu0 0.0
    %116 = vmatpush1.msra.mxu0 0.0
    %117 = vmatprep.subr.mxu0 0.0
    %118 = vmatpush1.msra.mxu0 0.0
    %119 = vmatprep.subr.mxu0 0.0
    %120 = vmatpush1.msra.mxu0 0.0
    %121 = vmatprep.subr.mxu0 0.0
    %122 = vmatpush1.msra.mxu0 0.0
    %123 = vmatprep.subr.mxu0 0.0
    %124 = vmatpush1.msra.mxu0 0.0
    %125 = vmatprep.subr.mxu0 0.0
    %126 = vmatpush1.msra.mxu0 0.0
    %127 = vmatprep.subr.mxu0 0.0
    %128 = vmatpush1.msra.mxu0 0.0
    %129 = vmatprep.subr.mxu0 0.0
    %130 = vmatpush1.msra.mxu0 0.0
    %131 = vmatprep.mubr.f32.mxu0 0.0
    %132 = vmatmul.mubr.f32.gmra.mrb[0].mxu0 %v65
    %v133 = vpop.f32.mrb[0].mxu0
    %v134 = vadd.f32 %v62, %v133
    %v135 = vpop.f32.mrb[0].mxu0
    %136 = vdwg.mxu0
    %v137 = vmax.f32 %v134, 0.0
    %v138 = vld [vmem:[#allocation5] sm:$0xff]
    %v139 = vld [vmem:[#allocation5 + $0x8] sm:$0xff]
    %v140 = vld [vmem:[#allocation5 + $0x10] sm:$0xff]
    %v141 = vld [vmem:[#allocation5 + $0x18] sm:$0xff]
    %v142 = vld [vmem:[#allocation5 + $0x20] sm:$0xff]
    %v143 = vld [vmem:[#allocation5 + $0x28] sm:$0xff]
    %v144 = vld [vmem:[#allocation5 + $0x30] sm:$0xff]
    %v145 = vld [vmem:[#allocation5 + $0x38] sm:$0xff]
    %v146 = vld [vmem:[#allocation5 + $0x40] sm:$0xff]
    %v147 = vld [vmem:[#allocation5 + $0x48] sm:$0xff]
    %v148 = vld [vmem:[#allocation5 + $0x50] sm:$0xff]
    %v149 = vld [vmem:[#allocation5 + $0x58] sm:$0xff]
    %v150 = vld [vmem:[#allocation5 + $0x60] sm:$0xff]
    %v151 = vld [vmem:[#allocation5 + $0x68] sm:$0xff]
    %v152 = vld [vmem:[#allocation5 + $0x70] sm:$0xff]
    %v153 = vld [vmem:[#allocation5 + $0x78] sm:$0xff]
    %v154 = vld [vmem:[%s4 + $0x1] sm:$0x1]
    %v155 = vlaneseq
    %v156 = vshrl.u32 %v155, 7
    %v157 = vsub.s32 0, %v156
    %v158 = vrot.slane %v154, %v157
    %159 = vmatprep.subr.mxu0 0.0
    %160 = vmatpush1.msra.mxu0 %v138
    %161 = vmatprep.subr.mxu0 0.0
    %162 = vmatpush1.msra.mxu0 %v139
    %163 = vmatprep.subr.mxu0 0.0
    %164 = vmatpush1.msra.mxu0 %v140
    %165 = vmatprep.subr.mxu0 0.0
    %166 = vmatpush1.msra.mxu0 %v141
    %167 = vmatprep.subr.mxu0 0.0
    %168 = vmatpush1.msra.mxu0 %v142
    %169 = vmatprep.subr.mxu0 0.0
    %170 = vmatpush1.msra.mxu0 %v143
    %171 = vmatprep.subr.mxu0 0.0
    %172 = vmatpush1.msra.mxu0 %v144
    %173 = vmatprep.subr.mxu0 0.0
    %174 = vmatpush1.msra.mxu0 %v145
    %175 = vmatprep.subr.mxu0 0.0
    %176 = vmatpush1.msra.mxu0 %v146
    %177 = vmatprep.subr.mxu0 0.0
    %178 = vmatpush1.msra.mxu0 %v147
    %179 = vmatprep.subr.mxu0 0.0
    %180 = vmatpush1.msra.mxu0 %v148
    %181 = vmatprep.subr.mxu0 0.0
    %182 = vmatpush1.msra.mxu0 %v149
    %183 = vmatprep.subr.mxu0 0.0
    %184 = vmatpush1.msra.mxu0 %v150
    %185 = vmatprep.subr.mxu0 0.0
    %186 = vmatpush1.msra.mxu0 %v151
    %187 = vmatprep.subr.mxu0 0.0
    %188 = vmatpush1.msra.mxu0 %v152
    %189 = vmatprep.subr.mxu0 0.0
    %190 = vmatpush1.msra.mxu0 %v153
    %191 = vmatprep.subr.mxu0 0.0
    %192 = vmatpush1.msra.mxu0 0.0
    %193 = vmatprep.subr.mxu0 0.0
    %194 = vmatpush1.msra.mxu0 0.0
    %195 = vmatprep.subr.mxu0 0.0
    %196 = vmatpush1.msra.mxu0 0.0
    %197 = vmatprep.subr.mxu0 0.0
    %198 = vmatpush1.msra.mxu0 0.0
    %199 = vmatprep.subr.mxu0 0.0
    %200 = vmatpush1.msra.mxu0 0.0
    %201 = vmatprep.subr.mxu0 0.0
    %202 = vmatpush1.msra.mxu0 0.0
    %203 = vmatprep.subr.mxu0 0.0
    %204 = vmatpush1.msra.mxu0 0.0
    %205 = vmatprep.subr.mxu0 0.0
    %206 = vmatpush1.msra.mxu0 0.0
    %207 = vmatprep.subr.mxu0 0.0
    %208 = vmatpush1.msra.mxu0 0.0
    %209 = vmatprep.subr.mxu0 0.0
    %210 = vmatpush1.msra.mxu0 0.0
    %211 = vmatprep.subr.mxu0 0.0
    %212 = vmatpush1.msra.mxu0 0.0
    %213 = vmatprep.subr.mxu0 0.0
    %214 = vmatpush1.msra.mxu0 0.0
    %215 = vmatprep.subr.mxu0 0.0
    %216 = vmatpush1.msra.mxu0 0.0
    %217 = vmatprep.subr.mxu0 0.0
    %218 = vmatpush1.msra.mxu0 0.0
    %219 = vmatprep.subr.mxu0 0.0
    %220 = vmatpush1.msra.mxu0 0.0
    %221 = vmatprep.subr.mxu0 0.0
    %222 = vmatpush1.msra.mxu0 0.0
    %223 = vmatprep.mubr.f32.mxu0 0.0
    %224 = vmatmul.mubr.f32.gmra.mrb[0].mxu0 %v137
    %v225 = vpop.f32.mrb[0].mxu0
    %v226 = vadd.f32 %v158, %v225
    %v227 = vpop.f32.mrb[0].mxu0
    %228 = vdwg.mxu0
    %v229 = vmax.f32 %v226, 0.0
    %s230 = scalar_lea.vmem [#allocation5], 128
    %v231 = vld [vmem:[%s230] sm:$0xff]
    %v232 = vld [vmem:[%s230 + $0x8] sm:$0xff]
    %v233 = vld [vmem:[%s230 + $0x10] sm:$0xff]
    %v234 = vld [vmem:[%s230 + $0x18] sm:$0xff]
    %v235 = vld [vmem:[%s230 + $0x20] sm:$0xff]
    %v236 = vld [vmem:[%s230 + $0x28] sm:$0xff]
    %v237 = vld [vmem:[%s230 + $0x30] sm:$0xff]
    %v238 = vld [vmem:[%s230 + $0x38] sm:$0xff]
    %v239 = vld [vmem:[%s230 + $0x40] sm:$0xff]
    %v240 = vld [vmem:[%s230 + $0x48] sm:$0xff]
    %v241 = vld [vmem:[%s230 + $0x50] sm:$0xff]
    %v242 = vld [vmem:[%s230 + $0x58] sm:$0xff]
    %v243 = vld [vmem:[%s230 + $0x60] sm:$0xff]
    %v244 = vld [vmem:[%s230 + $0x68] sm:$0xff]
    %v245 = vld [vmem:[%s230 + $0x70] sm:$0xff]
    %v246 = vld [vmem:[%s230 + $0x78] sm:$0xff]
    %v247 = vld [vmem:[%s4 + $0x2] sm:$0x1]
    %v248 = vlaneseq
    %v249 = vshrl.u32 %v248, 7
    %v250 = vsub.s32 0, %v249
    %v251 = vrot.slane %v247, %v250
    %252 = vmatprep.subr.mxu0 0.0
    %253 = vmatpush1.msra.mxu0 %v231
    %254 = vmatprep.subr.mxu0 0.0
    %255 = vmatpush1.msra.mxu0 %v232
    %256 = vmatprep.subr.mxu0 0.0
    %257 = vmatpush1.msra.mxu0 %v233
    %258 = vmatprep.subr.mxu0 0.0
    %259 = vmatpush1.msra.mxu0 %v234
    %260 = vmatprep.subr.mxu0 0.0
    %261 = vmatpush1.msra.mxu0 %v235
    %262 = vmatprep.subr.mxu0 0.0
    %263 = vmatpush1.msra.mxu0 %v236
    %264 = vmatprep.subr.mxu0 0.0
    %265 = vmatpush1.msra.mxu0 %v237
    %266 = vmatprep.subr.mxu0 0.0
    %267 = vmatpush1.msra.mxu0 %v238
    %268 = vmatprep.subr.mxu0 0.0
    %269 = vmatpush1.msra.mxu0 %v239
    %270 = vmatprep.subr.mxu0 0.0
    %271 = vmatpush1.msra.mxu0 %v240
    %272 = vmatprep.subr.mxu0 0.0
    %273 = vmatpush1.msra.mxu0 %v241
    %274 = vmatprep.subr.mxu0 0.0
    %275 = vmatpush1.msra.mxu0 %v242
    %276 = vmatprep.subr.mxu0 0.0
    %277 = vmatpush1.msra.mxu0 %v243
    %278 = vmatprep.subr.mxu0 0.0
    %279 = vmatpush1.msra.mxu0 %v244
    %280 = vmatprep.subr.mxu0 0.0
    %281 = vmatpush1.msra.mxu0 %v245
    %282 = vmatprep.subr.mxu0 0.0
    %283 = vmatpush1.msra.mxu0 %v246
    %284 = vmatprep.subr.mxu0 0.0
    %285 = vmatpush1.msra.mxu0 0.0
    %286 = vmatprep.subr.mxu0 0.0
    %287 = vmatpush1.msra.mxu0 0.0
    %288 = vmatprep.subr.mxu0 0.0
    %289 = vmatpush1.msra.mxu0 0.0
    %290 = vmatprep.subr.mxu0 0.0
    %291 = vmatpush1.msra.mxu0 0.0
    %292 = vmatprep.subr.mxu0 0.0
    %293 = vmatpush1.msra.mxu0 0.0
    %294 = vmatprep.subr.mxu0 0.0
    %295 = vmatpush1.msra.mxu0 0.0
    %296 = vmatprep.subr.mxu0 0.0
    %297 = vmatpush1.msra.mxu0 0.0
    %298 = vmatprep.subr.mxu0 0.0
    %299 = vmatpush1.msra.mxu0 0.0
    %300 = vmatprep.subr.mxu0 0.0
    %301 = vmatpush1.msra.mxu0 0.0
    %302 = vmatprep.subr.mxu0 0.0
    %303 = vmatpush1.msra.mxu0 0.0
    %304 = vmatprep.subr.mxu0 0.0
    %305 = vmatpush1.msra.mxu0 0.0
    %306 = vmatprep.subr.mxu0 0.0
    %307 = vmatpush1.msra.mxu0 0.0
    %308 = vmatprep.subr.mxu0 0.0
    %309 = vmatpush1.msra.mxu0 0.0
    %310 = vmatprep.subr.mxu0 0.0
    %311 = vmatpush1.msra.mxu0 0.0
    %312 = vmatprep.subr.mxu0 0.0
    %313 = vmatpush1.msra.mxu0 0.0
    %314 = vmatprep.subr.mxu0 0.0
    %315 = vmatpush1.msra.mxu0 0.0
    %316 = vmatprep.mubr.f32.mxu0 0.0
    %317 = vmatmul.mubr.f32.gmra.mrb[0].mxu0 %v229
    %v318 = vpop.f32.mrb[0].mxu0
    %v319 = vadd.f32 %v251, %v318
    %v320 = vpop.f32.mrb[0].mxu0
    %321 = vdwg.mxu0
    %v322 = vmax.f32 %v319, 0.0
    %s323 = scalar_lea.vmem [#allocation5], 256
    %v324 = vld [vmem:[%s323] sm:$0xff]
    %v325 = vld [vmem:[%s323 + $0x8] sm:$0xff]
    %v326 = vld [vmem:[%s323 + $0x10] sm:$0xff]
    %v327 = vld [vmem:[%s323 + $0x18] sm:$0xff]
    %v328 = vld [vmem:[%s323 + $0x20] sm:$0xff]
    %v329 = vld [vmem:[%s323 + $0x28] sm:$0xff]
    %v330 = vld [vmem:[%s323 + $0x30] sm:$0xff]
    %v331 = vld [vmem:[%s323 + $0x38] sm:$0xff]
    %v332 = vld [vmem:[%s323 + $0x40] sm:$0xff]
    %v333 = vld [vmem:[%s323 + $0x48] sm:$0xff]
    %v334 = vld [vmem:[%s323 + $0x50] sm:$0xff]
    %v335 = vld [vmem:[%s323 + $0x58] sm:$0xff]
    %v336 = vld [vmem:[%s323 + $0x60] sm:$0xff]
    %v337 = vld [vmem:[%s323 + $0x68] sm:$0xff]
    %v338 = vld [vmem:[%s323 + $0x70] sm:$0xff]
    %v339 = vld [vmem:[%s323 + $0x78] sm:$0xff]
    %v340 = vld [vmem:[%s4 + $0x3] sm:$0x1]
    %v341 = vlaneseq
    %v342 = vshrl.u32 %v341, 7
    %v343 = vsub.s32 0, %v342
    %v344 = vrot.slane %v340, %v343
    %345 = vmatprep.subr.mxu0 0.0
    %346 = vmatpush1.msra.mxu0 %v324
    %347 = vmatprep.subr.mxu0 0.0
    %348 = vmatpush1.msra.mxu0 %v325
    %349 = vmatprep.subr.mxu0 0.0
    %350 = vmatpush1.msra.mxu0 %v326
    %351 = vmatprep.subr.mxu0 0.0
    %352 = vmatpush1.msra.mxu0 %v327
    %353 = vmatprep.subr.mxu0 0.0
    %354 = vmatpush1.msra.mxu0 %v328
    %355 = vmatprep.subr.mxu0 0.0
    %356 = vmatpush1.msra.mxu0 %v329
    %357 = vmatprep.subr.mxu0 0.0
    %358 = vmatpush1.msra.mxu0 %v330
    %359 = vmatprep.subr.mxu0 0.0
    %360 = vmatpush1.msra.mxu0 %v331
    %361 = vmatprep.subr.mxu0 0.0
    %362 = vmatpush1.msra.mxu0 %v332
    %363 = vmatprep.subr.mxu0 0.0
    %364 = vmatpush1.msra.mxu0 %v333
    %365 = vmatprep.subr.mxu0 0.0
    %366 = vmatpush1.msra.mxu0 %v334
    %367 = vmatprep.subr.mxu0 0.0
    %368 = vmatpush1.msra.mxu0 %v335
    %369 = vmatprep.subr.mxu0 0.0
    %370 = vmatpush1.msra.mxu0 %v336
    %371 = vmatprep.subr.mxu0 0.0
    %372 = vmatpush1.msra.mxu0 %v337
    %373 = vmatprep.subr.mxu0 0.0
    %374 = vmatpush1.msra.mxu0 %v338
    %375 = vmatprep.subr.mxu0 0.0
    %376 = vmatpush1.msra.mxu0 %v339
    %377 = vmatprep.subr.mxu0 0.0
    %378 = vmatpush1.msra.mxu0 0.0
    %379 = vmatprep.subr.mxu0 0.0
    %380 = vmatpush1.msra.mxu0 0.0
    %381 = vmatprep.subr.mxu0 0.0
    %382 = vmatpush1.msra.mxu0 0.0
    %383 = vmatprep.subr.mxu0 0.0
    %384 = vmatpush1.msra.mxu0 0.0
    %385 = vmatprep.subr.mxu0 0.0
    %386 = vmatpush1.msra.mxu0 0.0
    %387 = vmatprep.subr.mxu0 0.0
    %388 = vmatpush1.msra.mxu0 0.0
    %389 = vmatprep.subr.mxu0 0.0
    %390 = vmatpush1.msra.mxu0 0.0
    %391 = vmatprep.subr.mxu0 0.0
    %392 = vmatpush1.msra.mxu0 0.0
    %393 = vmatprep.subr.mxu0 0.0
    %394 = vmatpush1.msra.mxu0 0.0
    %395 = vmatprep.subr.mxu0 0.0
    %396 = vmatpush1.msra.mxu0 0.0
    %397 = vmatprep.subr.mxu0 0.0
    %398 = vmatpush1.msra.mxu0 0.0
    %399 = vmatprep.subr.mxu0 0.0
    %400 = vmatpush1.msra.mxu0 0.0
    %401 = vmatprep.subr.mxu0 0.0
    %402 = vmatpush1.msra.mxu0 0.0
    %403 = vmatprep.subr.mxu0 0.0
    %404 = vmatpush1.msra.mxu0 0.0
    %405 = vmatprep.subr.mxu0 0.0
    %406 = vmatpush1.msra.mxu0 0.0
    %407 = vmatprep.subr.mxu0 0.0
    %408 = vmatpush1.msra.mxu0 0.0
    %409 = vmatprep.mubr.f32.mxu0 0.0
    %410 = vmatmul.mubr.f32.gmra.mrb[0].mxu0 %v322
    %v411 = vpop.f32.mrb[0].mxu0
    %v412 = vadd.f32 %v344, %v411
    %v413 = vpop.f32.mrb[0].mxu0
    %414 = vdwg.mxu0
    %s415 = scalar_lea.vmem [#allocation5], 384
    %v416 = vld [vmem:[%s415] sm:$0xff]
    %v417 = vld [vmem:[%s415 + $0x8] sm:$0xff]
    %v418 = vld [vmem:[%s415 + $0x10] sm:$0xff]
    %v419 = vld [vmem:[%s415 + $0x18] sm:$0xff]
    %v420 = vld [vmem:[%s415 + $0x20] sm:$0xff]
    %v421 = vld [vmem:[%s415 + $0x28] sm:$0xff]
    %v422 = vld [vmem:[%s415 + $0x30] sm:$0xff]
    %v423 = vld [vmem:[%s415 + $0x38] sm:$0xff]
    %v424 = vld [vmem:[%s415 + $0x40] sm:$0xff]
    %v425 = vld [vmem:[%s415 + $0x48] sm:$0xff]
    %v426 = vld [vmem:[%s415 + $0x50] sm:$0xff]
    %v427 = vld [vmem:[%s415 + $0x58] sm:$0xff]
    %v428 = vld [vmem:[%s415 + $0x60] sm:$0xff]
    %v429 = vld [vmem:[%s415 + $0x68] sm:$0xff]
    %v430 = vld [vmem:[%s415 + $0x70] sm:$0xff]
    %v431 = vld [vmem:[%s415 + $0x78] sm:$0xff]
    %v432 = vld [vmem:[%s4 + $0x4] sm:$0x1]
    %v433 = vlaneseq
    %v434 = vshrl.u32 %v433, 7
    %v435 = vsub.s32 0, %v434
    %v436 = vrot.slane %v432, %v435
    %437 = vmatprep.subr.mxu0 0.0
    %438 = vmatpush1.msra.mxu0 %v416
    %439 = vmatprep.subr.mxu0 0.0
    %440 = vmatpush1.msra.mxu0 %v417
    %441 = vmatprep.subr.mxu0 0.0
    %442 = vmatpush1.msra.mxu0 %v418
    %443 = vmatprep.subr.mxu0 0.0
    %444 = vmatpush1.msra.mxu0 %v419
    %445 = vmatprep.subr.mxu0 0.0
    %446 = vmatpush1.msra.mxu0 %v420
    %447 = vmatprep.subr.mxu0 0.0
    %448 = vmatpush1.msra.mxu0 %v421
    %449 = vmatprep.subr.mxu0 0.0
    %450 = vmatpush1.msra.mxu0 %v422
    %451 = vmatprep.subr.mxu0 0.0
    %452 = vmatpush1.msra.mxu0 %v423
    %453 = vmatprep.subr.mxu0 0.0
    %454 = vmatpush1.msra.mxu0 %v424
    %455 = vmatprep.subr.mxu0 0.0
    %456 = vmatpush1.msra.mxu0 %v425
    %457 = vmatprep.subr.mxu0 0.0
    %458 = vmatpush1.msra.mxu0 %v426
    %459 = vmatprep.subr.mxu0 0.0
    %460 = vmatpush1.msra.mxu0 %v427
    %461 = vmatprep.subr.mxu0 0.0
    %462 = vmatpush1.msra.mxu0 %v428
    %463 = vmatprep.subr.mxu0 0.0
    %464 = vmatpush1.msra.mxu0 %v429
    %465 = vmatprep.subr.mxu0 0.0
    %466 = vmatpush1.msra.mxu0 %v430
    %467 = vmatprep.subr.mxu0 0.0
    %468 = vmatpush1.msra.mxu0 %v431
    %469 = vmatprep.subr.mxu0 0.0
    %470 = vmatpush1.msra.mxu0 0.0
    %471 = vmatprep.subr.mxu0 0.0
    %472 = vmatpush1.msra.mxu0 0.0
    %473 = vmatprep.subr.mxu0 0.0
    %474 = vmatpush1.msra.mxu0 0.0
    %475 = vmatprep.subr.mxu0 0.0
    %476 = vmatpush1.msra.mxu0 0.0
    %477 = vmatprep.subr.mxu0 0.0
    %478 = vmatpush1.msra.mxu0 0.0
    %479 = vmatprep.subr.mxu0 0.0
    %480 = vmatpush1.msra.mxu0 0.0
    %481 = vmatprep.subr.mxu0 0.0
    %482 = vmatpush1.msra.mxu0 0.0
    %483 = vmatprep.subr.mxu0 0.0
    %484 = vmatpush1.msra.mxu0 0.0
    %485 = vmatprep.subr.mxu0 0.0
    %486 = vmatpush1.msra.mxu0 0.0
    %487 = vmatprep.subr.mxu0 0.0
    %488 = vmatpush1.msra.mxu0 0.0
    %489 = vmatprep.subr.mxu0 0.0
    %490 = vmatpush1.msra.mxu0 0.0
    %491 = vmatprep.subr.mxu0 0.0
    %492 = vmatpush1.msra.mxu0 0.0
    %493 = vmatprep.subr.mxu0 0.0
    %494 = vmatpush1.msra.mxu0 0.0
    %495 = vmatprep.subr.mxu0 0.0
    %496 = vmatpush1.msra.mxu0 0.0
    %497 = vmatprep.subr.mxu0 0.0
    %498 = vmatpush1.msra.mxu0 0.0
    %499 = vmatprep.subr.mxu0 0.0
    %500 = vmatpush1.msra.mxu0 0.0
    %501 = vmatprep.mubr.f32.mxu0 0.0
    %502 = vmatmul.mubr.f32.gmra.mrb[0].mxu0 %v322
    %v503 = vpop.f32.mrb[0].mxu0
    %v504 = vadd.f32 %v436, %v503
    %v505 = vpop.f32.mrb[0].mxu0
    %506 = vdwg.mxu0
    %v507 = vld [vmem:[%s1] sm:$0xff]
    %v508 = vmul.f32 %v412, 1.442695
    %v509 = vpow.pop %v508
    %v510 = vmul.f32 %v509, %v507
    %511 = vadd.xlane.f32.xlu0 %v510
    %v512 = vpop.xlane.xlu0 %511
    %v513 = vadd.f32 %v512, 1e-05
    %v514 = vrcp.pop %v513
    %v515 = vmul.f32 %v510, %v514
    %v516 = vmul.f32 %v504, 1.442695
    %v517 = vpow.pop %v516
    %v518 = vmul.f32 %v517, %v507
    %519 = vadd.xlane.f32.xlu0 %v518
    %v520 = vpop.xlane.xlu0 %519
    %v521 = vadd.f32 %v520, 1e-05
    %v522 = vrcp.pop %v521
    %v523 = vmul.f32 %v518, %v522
    %524 = vadd.xlane.f32.xlu0 %v515
    %v525 = vpop.xlane.xlu0 %524
    %v526 = vrot.slane %v525, 4
    %v527 = vadd.f32 %v525, %v526
    %v528 = vrot.slane %v527, 2
    %v529 = vadd.f32 %v527, %v528
    %v530 = vrot.slane %v529, 1
    %v531 = vadd.f32 %v529, %v530
    %s532 = vtos %v531
    %s533 = smul.f32 %s532, 0.001953125
    %v534 = vadd.f32 %v523, %v515
    %v535 = vstv %s533
    %v536 = vsub.f32 %v534, %v535
    %537 = vst [vmem:[#allocation7] sm:$0xff] %v536
    // Predicated region
    $region30: #{ddqn_forward.1} parent=1 // pred_check
      _
    $region31: #{ddqn_forward.1} parent=1 // pred_check_branch
      %539 = sbr.rel (0) target = $region33
    $region32: #{ddqn_forward.1} parent=1 // pred_region
      %s541 = ssub.s32 128, 128
      %542 = vsyncadd [#allocation4], %s541
      %s544 = sshll.u32 [#allocation7], 4
      %s545 = int_to_ptr.vmem [resolvable:$true] %s544
      %547 = dma.vmem_to_hbm [thread:$0]  %s545, 128, %s5, [#allocation4]
    $region33: #{ddqn_forward.1} parent=1 // pred_fallthru
      _
    // Predicated region
    $region34: #{ddqn_forward.1} parent=1 // pred_check
      _
    $region35: #{ddqn_forward.1} parent=1 // pred_check_branch
      %549 = sbr.rel (0) target = $region37
    $region36: #{ddqn_forward.1} parent=1 // pred_region
      %550 = dma.done [#allocation4], 128
    $region37: #{ddqn_forward.1} parent=1 // pred_fallthru
      _
    %551 = vsyncpa [#allocation3], 1
    %552 = vsyncpa [#allocation6], 1
    %553 = vsyncpa [#allocation4], 1

</llo_original>
